<compile_context>
chip_gen: v5e
topology: v5e:2x2
jax: 0.10.0
libtpu: 0.0.40
codegen_flags: <defaults>
</compile_context>

<pallas_src>
import functools

import jax
import jax.numpy as jnp
from jax import lax
from jax.experimental import pallas as pl
from jax.experimental.pallas import tpu as pltpu


def _bce_logits_kernel(x_ref, t_ref, out_ref, acc_ref, *, tiles_per_core,
                       total_tiles, total_elems, tn, lane, needs_mask,
                       needs_guard):
    p = pl.program_id(0)            # core-parallel axis
    i = pl.program_id(1)            # reduction (arbitrary) axis
    tile_id = p * tiles_per_core + i

    @pl.when(i == 0)
    def _init():
        acc_ref[...] = jnp.zeros_like(acc_ref)

    def _accumulate():
        x = x_ref[...].astype(jnp.float32)   # cast in-kernel (bf16/int8 OK)
        t = t_ref[...].astype(jnp.float32)
        # Numerically-stable BCE-with-logits (same form PyTorch uses).
        per = jnp.maximum(x, 0.0) - x * t + jnp.log1p(jnp.exp(-jnp.abs(x)))

        if needs_mask:
            is_last = tile_id == (total_tiles - 1)

            @pl.when(jnp.logical_not(is_last))
            def _full_tile():
                # Sublane-only reduce -> (1, lane); no cross-lane work here.
                acc_ref[...] += jnp.sum(per, axis=0, keepdims=True)

            @pl.when(is_last)
            def _tail_tile():
                # Mask padded / ragged elements by flat element index.
                # Keep the select form (NOT multiply-by-mask) so NaN/Inf from
                # garbage rows can never propagate.
                row = lax.broadcasted_iota(jnp.int32, per.shape, 0)
                col = lax.broadcasted_iota(jnp.int32, per.shape, 1)
                flat = (tile_id * tn + row) * lane + col
                masked = jnp.where(flat < total_elems, per, 0.0)
                acc_ref[...] += jnp.sum(masked, axis=0, keepdims=True)
        else:
            acc_ref[...] += jnp.sum(per, axis=0, keepdims=True)

    if needs_guard:
        # Odd tile count split over 2 cores: skip the clamped overflow tile.
        pl.when(tile_id < total_tiles)(_accumulate)
    else:
        _accumulate()

    @pl.when(i == tiles_per_core - 1)
    def _finalize():
        # Fold the (1, lane) accumulator to a lane-dense (1, 128) partial.
        a = acc_ref[...]
        folded = a[:, 0:128]
        for off in range(128, lane, 128):
            folded = folded + a[:, off:off + 128]
        out_ref[...] = folded


def bce_with_logits_loss(x, target, *, lane=512, block_bytes=4 * 1024 * 1024,
                         block_rows=None, num_cores=2):
    """Forward pass of nn.BCEWithLogitsLoss() (mean reduction).

    x:      logits, any shape/dtype (flattened internally, cast in-kernel).
    target: same shape as x; labels/probabilities in [0, 1] (any real dtype).
    Returns a scalar float32.
    """
    assert x.shape == target.shape, (x.shape, target.shape)
    assert lane % 128 == 0, "lane width must be a multiple of 128"

    total = int(x.size)
    xf = x.reshape(-1)
    tf = target.reshape(-1)

    # Lane-dense view (M, lane).  Only pad (one extra copy) when the flat
    # size is not already a multiple of the lane width.
    m = pl.cdiv(total, lane)
    padded = m * lane
    if padded != total:
        xf = jnp.pad(xf, (0, padded - total))   # zero pad; masked in-kernel
        tf = jnp.pad(tf, (0, padded - total))
    x2 = xf.reshape(m, lane)
    t2 = tf.reshape(m, lane)

    # Sublane multiple for the strictest dtype present (8 f32, 16 bf16, 32 i8).
    min_itemsize = min(x2.dtype.itemsize, t2.dtype.itemsize)
    sub = {1: 32, 2: 16, 4: 8}.get(min_itemsize, 8)

    # Row tile from a VMEM byte budget: (x block + t block) <= block_bytes;
    # ~2x that live with double buffering, safely under every generation's
    # default scoped VMEM (16 MiB v5e is the tightest).
    if block_rows is None:
        bytes_per_row = lane * (x2.dtype.itemsize + t2.dtype.itemsize)
        block_rows = max(sub, (block_bytes // bytes_per_row) // sub * sub)
    if block_rows >= m:
        tn = m                                   # full-extent block: always legal
    else:
        tn = max(sub, (block_rows // sub) * sub)

    total_tiles = pl.cdiv(m, tn)
    ncores = max(1, min(num_cores, total_tiles))
    tiles_per_core = pl.cdiv(total_tiles, ncores)
    needs_guard = (ncores * tiles_per_core) != total_tiles
    needs_mask = (padded != total) or (m % tn != 0)
    last_tile = total_tiles - 1
    inv_total = 1.0 / float(total)

    def in_map(p, i):
        t_idx = p * tiles_per_core + i
        if needs_guard:
            t_idx = jnp.minimum(t_idx, last_tile)   # clamp overflow tile
        return (t_idx, 0)

    kernel = functools.partial(
        _bce_logits_kernel,
        tiles_per_core=tiles_per_core, total_tiles=total_tiles,
        total_elems=total, tn=tn, lane=lane,
        needs_mask=needs_mask, needs_guard=needs_guard)

    out = pl.pallas_call(
        kernel,
        out_shape=jax.ShapeDtypeStruct((1, ncores * 128), jnp.float32),
        grid_spec=pltpu.PrefetchScalarGridSpec(
            num_scalar_prefetch=0,
            grid=(ncores, tiles_per_core),
            in_specs=[
                pl.BlockSpec((tn, lane), in_map),
                pl.BlockSpec((tn, lane), in_map),
            ],
            out_specs=pl.BlockSpec((1, 128), lambda p, i: (0, p)),
            scratch_shapes=[pltpu.VMEM((1, lane), jnp.float32)],
        ),
        compiler_params=pltpu.CompilerParams(
            dimension_semantics=("parallel", "arbitrary")),
        cost_estimate=pl.CostEstimate(
            flops=5 * total,
            transcendentals=2 * total,
            bytes_accessed=int(total * x.dtype.itemsize
                               + total * target.dtype.itemsize
                               + 4 * ncores * 128)),
    )(x2, t2)

    return jnp.sum(out) * inv_total


def _reference(x, target):
    # Pure-JAX reference mirroring nn.BCEWithLogitsLoss (mean reduction).
    xf = x.astype(jnp.float32)
    tf = target.astype(jnp.float32)
    per = jnp.maximum(xf, 0.0) - xf * tf + jnp.log1p(jnp.exp(-jnp.abs(xf)))
    return jnp.mean(per)


if __name__ == "__main__":
    key = jax.random.PRNGKey(0)
    k1, k2, k3, k4, k5, k6 = jax.random.split(key, 6)

    # Case 1: module-implied shape (batch=2, channels=4, 16x16), default tiling.
    x1 = jax.random.normal(k1, (2, 4, 16, 16), dtype=jnp.float32)
    t1 = jax.random.bernoulli(k2, 0.5, (2, 4, 16, 16)).astype(jnp.float32)
    out1 = jax.block_until_ready(bce_with_logits_loss(x1, t1))
    ref1 = _reference(x1, t1)
    assert jnp.allclose(out1, ref1, atol=1e-5, rtol=1e-5), (out1, ref1)

    # Case 2: unaligned flat size -> exercises zero-padding + ragged-row tail
    # mask and the even 2-way core split (small forced tile).
    x2 = jax.random.normal(k3, (50, 37), dtype=jnp.float32)
    t2 = jax.random.uniform(k4, (50, 37), dtype=jnp.float32)
    out2 = jax.block_until_ready(
        bce_with_logits_loss(x2, t2, lane=128, block_rows=8))
    ref2 = _reference(x2, t2)
    assert jnp.allclose(out2, ref2, atol=1e-5, rtol=1e-5), (out2, ref2)

    # Case 3: odd number of tiles -> exercises the clamped overflow-tile guard.
    x3 = jax.random.normal(k5, (48, 64), dtype=jnp.float32)
    t3 = jax.random.bernoulli(k6, 0.5, (48, 64)).astype(jnp.float32)
    out3 = jax.block_until_ready(
        bce_with_logits_loss(x3, t3, lane=128, block_rows=8))
    ref3 = _reference(x3, t3)
    assert jnp.allclose(out3, ref3, atol=1e-5, rtol=1e-5), (out3, ref3)

    print("KERNEL_OK")
</pallas_src>

<mosaic_0001>
module attributes {stable_mosaic.version = 11 : i64} {
  func.func @_bce_logits_kernel(%arg0: i32, %arg1: i32, %arg2: memref<4x512xf32, #tpu.memory_space<vmem>>, %arg3: memref<4x512xf32, #tpu.memory_space<vmem>>, %arg4: memref<1x128xf32, #tpu.memory_space<vmem>>, %arg5: memref<1x512xf32, #tpu.memory_space<vmem>>) attributes {dimension_semantics = [#tpu.dimension_semantics<parallel>, #tpu.dimension_semantics<arbitrary>], iteration_bounds = array<i64: 1, 1>, scalar_prefetch = 0 : i64, scratch_operands = 1 : i64, tpu.core_type = #tpu.core_type<tc>, window_params = [{transform_indices = @transform_0, window_bounds = array<i64: 4, 512>}, {transform_indices = @transform_1, window_bounds = array<i64: 4, 512>}, {transform_indices = @transform_2, window_bounds = array<i64: 1, 128>}]} {
    %c0_i32 = arith.constant 0 : i32
    %0 = arith.cmpi eq, %arg1, %c0_i32 : i32
    %1 = arith.extui %0 : i1 to i32
    %c0_i32_0 = arith.constant 0 : i32
    %2 = arith.cmpi ne, %1, %c0_i32_0 : i32
    scf.if %2 {
      %cst_12 = arith.constant 0.000000e+00 : f32
      %23 = vector.broadcast %cst_12 : f32 to vector<1x512xf32>
      %c0_13 = arith.constant 0 : index
      %c0_14 = arith.constant 0 : index
      %24 = vector.load %arg5[%c0_13, %c0_14] : memref<1x512xf32, #tpu.memory_space<vmem>>, vector<1x512xf32>
      tpu.vector_store %arg5[%c0_13, %c0_14], %23 {strides = array<i32>} : memref<1x512xf32, #tpu.memory_space<vmem>>, vector<1x512xf32>,
    } else {
    }
    %c0 = arith.constant 0 : index
    %c0_1 = arith.constant 0 : index
    %3 = vector.load %arg2[%c0, %c0_1] : memref<4x512xf32, #tpu.memory_space<vmem>>, vector<4x512xf32>
    %c0_2 = arith.constant 0 : index
    %c0_3 = arith.constant 0 : index
    %4 = vector.load %arg3[%c0_2, %c0_3] : memref<4x512xf32, #tpu.memory_space<vmem>>, vector<4x512xf32>
    %cst = arith.constant 0.000000e+00 : f32
    %5 = vector.broadcast %cst : f32 to vector<4x512xf32>
    %6 = arith.maximumf %3, %5 : vector<4x512xf32>
    %7 = arith.mulf %3, %4 : vector<4x512xf32>
    %8 = arith.subf %6, %7 : vector<4x512xf32>
    %9 = math.absf %3 : vector<4x512xf32>
    %cst_4 = arith.constant 0.000000e+00 : f32
    %10 = vector.broadcast %cst_4 : f32 to vector<4x512xf32>
    %11 = arith.subf %10, %9 : vector<4x512xf32>
    %12 = math.exp %11 : vector<4x512xf32>
    %13 = math.log1p %12 : vector<4x512xf32>
    %14 = arith.addf %8, %13 : vector<4x512xf32>
    %c0_5 = arith.constant 0 : index
    %c0_6 = arith.constant 0 : index
    %15 = vector.load %arg5[%c0_5, %c0_6] : memref<1x512xf32, #tpu.memory_space<vmem>>, vector<1x512xf32>
    %cst_7 = arith.constant dense<0.000000e+00> : vector<512xf32>
    %16 = vector.multi_reduction <add>, %14, %cst_7 [0] : vector<4x512xf32> to vector<512xf32>
    %17 = vector.shape_cast %16 : vector<512xf32> to vector<1x512xf32>
    %18 = arith.addf %15, %17 : vector<1x512xf32>
    %c0_8 = arith.constant 0 : index
    %c0_9 = arith.constant 0 : index
    %19 = vector.load %arg5[%c0_8, %c0_9] : memref<1x512xf32, #tpu.memory_space<vmem>>, vector<1x512xf32>
    tpu.vector_store %arg5[%c0_8, %c0_9], %18 {strides = array<i32>} : memref<1x512xf32, #tpu.memory_space<vmem>>, vector<1x512xf32>,
    %c0_i32_10 = arith.constant 0 : i32
    %20 = arith.cmpi eq, %arg1, %c0_i32_10 : i32
    %21 = arith.extui %20 : i1 to i32
    %c0_i32_11 = arith.constant 0 : i32
    %22 = arith.cmpi ne, %21, %c0_i32_11 : i32
    scf.if %22 {
      %c0_12 = arith.constant 0 : index
      %c0_13 = arith.constant 0 : index
      %23 = vector.load %arg5[%c0_12, %c0_13] : memref<1x512xf32, #tpu.memory_space<vmem>>, vector<1x512xf32>
      %24 = vector.extract_strided_slice %23 {offsets = [0, 0], sizes = [1, 128], strides = [1, 1]} : vector<1x512xf32> to vector<1x128xf32>
      %25 = vector.extract_strided_slice %23 {offsets = [0, 128], sizes = [1, 128], strides = [1, 1]} : vector<1x512xf32> to vector<1x128xf32>
      %26 = arith.addf %24, %25 : vector<1x128xf32>
      %27 = vector.extract_strided_slice %23 {offsets = [0, 256], sizes = [1, 128], strides = [1, 1]} : vector<1x512xf32> to vector<1x128xf32>
      %28 = arith.addf %26, %27 : vector<1x128xf32>
      %29 = vector.extract_strided_slice %23 {offsets = [0, 384], sizes = [1, 128], strides = [1, 1]} : vector<1x512xf32> to vector<1x128xf32>
      %30 = arith.addf %28, %29 : vector<1x128xf32>
      %c0_14 = arith.constant 0 : index
      %c0_15 = arith.constant 0 : index
      %31 = vector.load %arg4[%c0_14, %c0_15] : memref<1x128xf32, #tpu.memory_space<vmem>>, vector<1x128xf32>
      tpu.vector_store %arg4[%c0_14, %c0_15], %30 {strides = array<i32>} : memref<1x128xf32, #tpu.memory_space<vmem>>, vector<1x128xf32>,
    } else {
    }
    return
  }
  func.func @transform_0(%arg0: i32, %arg1: i32) -> (i32, i32) {
    %c1_i32 = arith.constant 1 : i32
    %0 = arith.muli %arg0, %c1_i32 : i32
    %1 = arith.addi %0, %arg1 : i32
    %c0_i32 = arith.constant 0 : i32
    %c0_i32_0 = arith.constant 0 : i32
    return %1, %c0_i32 : i32, i32
  }
  func.func @transform_1(%arg0: i32, %arg1: i32) -> (i32, i32) {
    %c1_i32 = arith.constant 1 : i32
    %0 = arith.muli %arg0, %c1_i32 : i32
    %1 = arith.addi %0, %arg1 : i32
    %c0_i32 = arith.constant 0 : i32
    %c0_i32_0 = arith.constant 0 : i32
    return %1, %c0_i32 : i32, i32
  }
  func.func @transform_2(%arg0: i32, %arg1: i32) -> (i32, i32) {
    %c0_i32 = arith.constant 0 : i32
    %c0_i32_0 = arith.constant 0 : i32
    return %c0_i32, %arg0 : i32, i32
  }
}

</mosaic_0001>

<llo_original>
// kernel: tpu_custom_call.1
$region0: #{tpu_custom_call.1}
  #allocation0 [shape = 'u32[]', space=smem, size = 0x4, offset = 0x4, fixed_abs, tag = 'smem constant byte address 0x4 - core index']
  #allocation1 [shape = 'u32[72,128]{1,0:T(1,128)}', space=vmem, size = 0x9000, scoped, tag = 'internal scratch']
  #allocation2 [shape = 'f32[1,512]{1,0:T(1,128)}', space=vmem, size = 0x800, scoped, tag = 'scratch operand']
  %s0 = inlined_call_operand.hbm [shape: f32[4,512], index: 0, kind: input, shape index: {}]
  %s1 = inlined_call_operand.hbm [shape: f32[4,512], index: 1, kind: input, shape index: {}]
  %s2 = inlined_call_operand.hbm [shape: f32[1,128], index: 2, kind: output, shape index: {}]
  %s3 = sld [smem:[#allocation0]]
  $region34: #{tpu_custom_call.1} parent=0
    _
  %s5 = ssub.s32 1, %s3
  %s6 = scalar_select 0, %s5, %s3
  $region1: #{tpu_custom_call.1} parent=0
    #allocation3 [shape = 'u8[8192]{0}', space=vmem, size = 0x2000, scoped, tag = 'input window, operand 0, single buffered']
    #allocation4 [shape = 's32[1]{0}', space=sflag, size = 0x4, scoped, tag = 'scoped memory for tpu_custom_call.1']
    #allocation5 [shape = 's32[1]{0}', space=sflag, size = 0x4, scoped, tag = 'scoped memory for tpu_custom_call.1']
    #allocation6 [shape = 'u8[8192]{0}', space=vmem, size = 0x2000, scoped, tag = 'input window, operand 1, single buffered']
    #allocation7 [shape = 's32[1]{0}', space=sflag, size = 0x4, scoped, tag = 'scoped memory for tpu_custom_call.1']
    #allocation8 [shape = 'u8[512]{0}', space=vmem, size = 0x400, scoped, tag = 'output window, operand 0, single buffered']
    %7 = vsyncpa [#allocation4], 0
    %8 = vsyncpa [#allocation7], 0
    %9 = vsyncpa [#allocation5], 0
    // Predicated region
    $region2: #{tpu_custom_call.1} parent=1 // pred_check
      _
    $region3: #{tpu_custom_call.1} parent=1 // pred_check_branch
      %11 = sbr.rel (0) target = $region5
    $region4: #{tpu_custom_call.1} parent=1 // pred_region
      %s12 = sadd.s32 0, 0
      %14 = vsyncadd [#allocation4], 0
      %s15 = smul.addr %s12, 4
      %s16 = smul.addr %s15, 4
      %s17 = scalar_lea.hbm %s0, %s16
      %s19 = sshll.u32 %s17, 4
      %s20 = int_to_ptr.hbm [resolvable:$true] %s19
      %s21 = sshll.u32 [#allocation3], 4
      %s22 = int_to_ptr.vmem [resolvable:$true] %s21
      %24 = dma.hbm_to_vmem [thread:$0]  %s20, 256, %s22, [#allocation4]
    $region5: #{tpu_custom_call.1} parent=1 // pred_fallthru
      _
    // Predicated region
    $region6: #{tpu_custom_call.1} parent=1 // pred_check
      _
    $region7: #{tpu_custom_call.1} parent=1 // pred_check_branch
      %26 = sbr.rel (0) target = $region9
    $region8: #{tpu_custom_call.1} parent=1 // pred_region
      %s27 = sadd.s32 0, 0
      %29 = vsyncadd [#allocation7], 0
      %s30 = smul.addr %s27, 4
      %s31 = smul.addr %s30, 4
      %s32 = scalar_lea.hbm %s1, %s31
      %s34 = sshll.u32 %s32, 4
      %s35 = int_to_ptr.hbm [resolvable:$true] %s34
      %s36 = sshll.u32 [#allocation6], 4
      %s37 = int_to_ptr.vmem [resolvable:$true] %s36
      %39 = dma.hbm_to_vmem [thread:$0]  %s35, 256, %s37, [#allocation7]
    $region9: #{tpu_custom_call.1} parent=1 // pred_fallthru
      _
    // Predicated region
    $region10: #{tpu_custom_call.1} parent=1 // pred_check
      _
    $region11: #{tpu_custom_call.1} parent=1 // pred_check_branch
      %41 = sbr.rel (0) target = $region13
    $region12: #{tpu_custom_call.1} parent=1 // pred_region
      %43 = dma.done [#allocation4], 256
    $region13: #{tpu_custom_call.1} parent=1 // pred_fallthru
      _
    // Predicated region
    $region14: #{tpu_custom_call.1} parent=1 // pred_check
      _
    $region15: #{tpu_custom_call.1} parent=1 // pred_check_branch
      %45 = sbr.rel (0) target = $region17
    $region16: #{tpu_custom_call.1} parent=1 // pred_region
      %47 = dma.done [#allocation7], 256
    $region17: #{tpu_custom_call.1} parent=1 // pred_fallthru
      _
    %s48 = sadd.s32 0, 0
    %s49 = sadd.s32 0, 0
    %p50 = scmp.eq.s32.totalorder 0, 0
    // Predicated region
    $region18: #{tpu_custom_call.1} parent=1 // pred_check
      %p51 = pneg %p50
    $region19: #{tpu_custom_call.1} parent=1 // pred_check_branch
      %53 = sbr.rel (%p51) target = $region21
    $region20: #{tpu_custom_call.1} parent=1 // pred_region
      %v54 = vlaneseq
      %vm55 = vcmp.ge.s32.totalorder %v54, 0
      %vm56 = vcmp.lt.s32.totalorder %v54, 512
      %vm57 = vmand %vm55, %vm56
      %58 = vst.msk [vmem:[#allocation2] sm:$0xf] %vm57, 0.0
    $region21: #{tpu_custom_call.1} parent=1 // pred_fallthru
      _
    %v59 = vld [vmem:[#allocation3] sm:$0xff]
    %v60 = vld [vmem:[#allocation3 + $0x8] sm:$0xff]
    %v61 = vld [vmem:[#allocation6] sm:$0xff]
    %v62 = vld [vmem:[#allocation6 + $0x8] sm:$0xff]
    %v63 = vmax.f32 %v59, 0.0
    %v64 = vmax.f32 %v60, 0.0
    %v65 = vmul.f32 %v59, %v61
    %v66 = vmul.f32 %v60, %v62
    %v67 = vsub.f32 %v63, %v65
    %v68 = vsub.f32 %v64, %v66
    %v69 = vand.u32 2147483647, %v59
    %v70 = vand.u32 2147483647, %v60
    %v71 = vsub.f32 0.0, %v69
    %v72 = vsub.f32 0.0, %v70
    %v73 = vmul.f32 %v71, 1.442695
    %v74 = vpow.pop %v73
    %v75 = vmul.f32 %v72, 1.442695
    %v76 = vpow.pop %v75
    %v77 = vadd.f32 %v74, 1.0
    %v78 = vlog2.pop %v77
    %v79 = vmul.f32 %v78, 0.6931472
    %v80 = vmul.f32 -0.5, %v74
    %v81 = vadd.f32 %v80, 1.0
    %v82 = vmul.f32 %v81, %v74
    %v83 = vand.u32 2147483647, %v74
    %vm84 = vcmp.lt.f32.partialorder %v83, 0.0004427343
    %v85 = vsel %vm84, %v82, %v79
    %v86 = vadd.f32 %v76, 1.0
    %v87 = vlog2.pop %v86
    %v88 = vmul.f32 %v87, 0.6931472
    %v89 = vmul.f32 -0.5, %v76
    %v90 = vadd.f32 %v89, 1.0
    %v91 = vmul.f32 %v90, %v76
    %v92 = vand.u32 2147483647, %v76
    %vm93 = vcmp.lt.f32.partialorder %v92, 0.0004427343
    %v94 = vsel %vm93, %v91, %v88
    %v95 = vadd.f32 %v67, %v85
    %v96 = vadd.f32 %v68, %v94
    %v97 = vld [vmem:[#allocation2] sm:$0xf]
    %100 = vst [vmem:[#allocation1] ss:$2 sm:$0xff] %v95
    %s101 = scalar_lea.vmem [#allocation1], 16
    %102 = vst [vmem:[%s101] ss:$2 sm:$0xff] %v96
    %v103 = vld.sshfl [vmem:[#allocation1] sm:$0xff pattern:$0x75316420]
    %v104 = vld.sshfl [vmem:[#allocation1 + $0x8] sm:$0xff pattern:$0x75316420]
    %v105 = vld.sshfl [vmem:[#allocation1 + $0x10] sm:$0xff pattern:$0x75316420]
    %v106 = vld.sshfl [vmem:[#allocation1 + $0x18] sm:$0xff pattern:$0x75316420]
    %vm111 = vcmask 1043456
    %v112 = vsel %vm111, %v103, 0.0
    %v113 = vrot.slane %v112, 4
    %v114 = vadd.f32 %v112, %v113
    %v115 = vrot.slane %v114, 2
    %v116 = vadd.f32 %v114, %v115
    %v117 = vrot.slane %v116, 1
    %v118 = vadd.f32 %v116, %v117
    %v119 = vsel %vm111, %v104, 0.0
    %v120 = vrot.slane %v119, 4
    %v121 = vadd.f32 %v119, %v120
    %v122 = vrot.slane %v121, 2
    %v123 = vadd.f32 %v121, %v122
    %v124 = vrot.slane %v123, 1
    %v125 = vadd.f32 %v123, %v124
    %v126 = vsel %vm111, %v105, 0.0
    %v127 = vrot.slane %v126, 4
    %v128 = vadd.f32 %v126, %v127
    %v129 = vrot.slane %v128, 2
    %v130 = vadd.f32 %v128, %v129
    %v131 = vrot.slane %v130, 1
    %v132 = vadd.f32 %v130, %v131
    %v133 = vsel %vm111, %v106, 0.0
    %v134 = vrot.slane %v133, 4
    %v135 = vadd.f32 %v133, %v134
    %v136 = vrot.slane %v135, 2
    %v137 = vadd.f32 %v135, %v136
    %v138 = vrot.slane %v137, 1
    %v139 = vadd.f32 %v137, %v138
    %v144 = vrot.slane %v125, 7
    %v145 = vrot.slane %v132, 6
    %v146 = vrot.slane %v139, 5
    %vm147 = vcmask 1040384
    %v148 = vsel %vm147, %v118, %v144
    %vm149 = vcmask 1042434
    %v150 = vsel %vm149, %v145, %v146
    %vm151 = vcmask 1041408
    %v152 = vsel %vm151, %v148, %v150
    %v154 = vadd.f32 %v97, %v152
    %v155 = vlaneseq
    %vm156 = vcmp.ge.s32.totalorder %v155, 0
    %vm157 = vcmp.lt.s32.totalorder %v155, 512
    %vm158 = vmand %vm156, %vm157
    %159 = vst.msk [vmem:[#allocation2] sm:$0xf] %vm158, %v154
    // Predicated region
    $region22: #{tpu_custom_call.1} parent=1 // pred_check
      %p160 = pneg %p50
    $region23: #{tpu_custom_call.1} parent=1 // pred_check_branch
      %162 = sbr.rel (%p160) target = $region25
    $region24: #{tpu_custom_call.1} parent=1 // pred_region
      %v163 = vld [vmem:[#allocation2] sm:$0xf]
      %v165 = vrot.slane %v163, 1
      %v167 = vadd.f32 %v163, %v165
      %v168 = vrot.slane %v163, 2
      %v170 = vadd.f32 %v167, %v168
      %v171 = vrot.slane %v163, 3
      %v173 = vadd.f32 %v170, %v171
      %174 = vst [vmem:[#allocation8] sm:$0x1] %v173
    $region25: #{tpu_custom_call.1} parent=1 // pred_fallthru
      _
    // Predicated region
    $region26: #{tpu_custom_call.1} parent=1 // pred_check
      _
    $region27: #{tpu_custom_call.1} parent=1 // pred_check_branch
      %176 = sbr.rel (0) target = $region29
    $region28: #{tpu_custom_call.1} parent=1 // pred_region
      %178 = vsyncadd [#allocation5], 0
      %s180 = sshll.u32 [#allocation8], 4
      %s181 = int_to_ptr.vmem [resolvable:$true] %s180
      %s182 = sshll.u32 %s2, 4
      %s183 = int_to_ptr.hbm [resolvable:$true] %s182
      %185 = dma.vmem_to_hbm [thread:$0]  %s181, 16, %s183, [#allocation5]
    $region29: #{tpu_custom_call.1} parent=1 // pred_fallthru
      _
    // Predicated region
    $region30: #{tpu_custom_call.1} parent=1 // pred_check
      _
    $region31: #{tpu_custom_call.1} parent=1 // pred_check_branch
      %187 = sbr.rel (0) target = $region33
    $region32: #{tpu_custom_call.1} parent=1 // pred_region
      %189 = dma.done [#allocation5], 16
    $region33: #{tpu_custom_call.1} parent=1 // pred_fallthru
      _
    %190 = vsyncpa [#allocation4], 1
    %191 = vsyncpa [#allocation7], 1
    %192 = vsyncpa [#allocation5], 1

</llo_original>
